<compile_context>
chip_gen: v7x
topology: tpu7x:2x2x1
jax: 0.10.0
libtpu: 0.0.40
codegen_flags: <defaults>
</compile_context>

<pallas_src>
import functools

import jax
import jax.numpy as jnp
from jax.experimental import pallas as pl
from jax.experimental.pallas import tpu as pltpu


VMEM_LIMIT_BYTES = 32 << 20   # scoped-VMEM limit: safe on v5e/v6e/v7x
ROW_BLOCK_BUDGET = 20 << 20   # bytes reserved for the double-buffered per-row blocks


def _round_up(x, m):
    return ((x + m - 1) // m) * m


def _choose_tiling(B, per_row_bytes, budget_bytes=ROW_BLOCK_BUDGET):
    """Pick batch block TB (multiple of 8) and padded batch B_pad (multiple of TB)."""
    B8 = _round_up(max(B, 1), 8)
    # 2x for double buffering of the streamed per-row blocks.
    cap = max(8, (budget_bytes // (2 * per_row_bytes)) // 8 * 8)
    n_blocks = max(1, -(-B8 // cap))
    if B8 >= 16:
        n_blocks = max(n_blocks, 2)          # keep both v7x TensorCores busy
    tb = _round_up(-(-B8 // n_blocks), 8)
    b_pad = _round_up(B8, tb)
    return tb, b_pad


def _pad_rows(a, n):
    if a.shape[0] == n:
        return a
    return jnp.pad(a, [(0, n - a.shape[0])] + [(0, 0)] * (a.ndim - 1))


def tree_rnn_agent_kernel(xh_ref, h_ref, wg_ref, bg_ref, wfc2_ref, bfc2_ref,
                          watt_ref, batt_ref, p2_ref, pb_ref, hh_ref, q_ref):
    """One batch block of the Tree_RNNAgent forward.

    xh_ref   : (TB, 2H)   bf16  [relu(embedding) | h_in]
    h_ref    : (TB, H)    f32   previous hidden state (aliased with hh output)
    wg_ref   : (2H, 4H)   bf16  fused GRU weight, columns = [r | z | n_x | n_h]
    bg_ref   : (1, 4H)    f32   fused GRU bias
    wfc2_ref : (H, WQ)    bf16  fc2 weight, zero-padded to WQ lanes
    bfc2_ref : (1, WQ)    f32   fc2 bias, zero-padded
    watt_ref : (TB, E*H)  bf16  merger-folded attack weights, lane-dense
    batt_ref : (TB, E)    f32   merger-folded attack bias
    p2_ref   : (E*H, WQ)  bf16  fused reduction+placement: P2[e*H+h, A+e] = 1
    pb_ref   : (E, WQ)    bf16  bias placement: Pb[e, A+e] = 1
    hh_ref   : (TB, H)    f32   new hidden state
    q_ref    : (TB, WQ)   f32   [q_normal | q_attack | 0-pad], one unmasked store
    """
    H = h_ref.shape[-1]
    E = batt_ref.shape[-1]

    # Fused GRUCell: one (TB,2H)@(2H,4H) bf16 MXU matmul gives all gate pre-activations.
    gates = jnp.dot(xh_ref[...], wg_ref[...],
                    preferred_element_type=jnp.float32) + bg_ref[...]
    h = h_ref[...]
    r = jax.nn.sigmoid(gates[:, 0 * H:1 * H])
    z = jax.nn.sigmoid(gates[:, 1 * H:2 * H])
    n = jnp.tanh(gates[:, 2 * H:3 * H] + r * gates[:, 3 * H:4 * H])
    hh = (1.0 - z) * n + z * h
    hh_ref[...] = hh

    hh_bf16 = hh.astype(jnp.bfloat16)

    # Basic (normal) action stream, already zero-padded to WQ lanes.
    q = jnp.dot(hh_bf16, wfc2_ref[...],
                preferred_element_type=jnp.float32) + bfc2_ref[...]           # (TB, WQ)

    # Entity-specific attack stream: bf16 elementwise product against the lane-dense
    # flattened weights, then a single 256-deep MXU contraction that simultaneously
    # reduces over H and scatters each enemy's Q into lane A+e of the output.
    hh_tiled = jnp.concatenate([hh_bf16] * E, axis=-1)                        # (TB, E*H)
    prod = hh_tiled * watt_ref[...]                                           # bf16
    q += jnp.dot(prod, p2_ref[...], preferred_element_type=jnp.float32)
    # per-(agent, enemy) bias, placed into lanes [A, A+E) with a tiny bf16 matmul
    q += jnp.dot(batt_ref[...].astype(jnp.bfloat16), pb_ref[...],
                 preferred_element_type=jnp.float32)

    q_ref[...] = q


@functools.partial(jax.jit, static_argnums=(0, 1, 2, 3, 4))
def tree_rnn_agent_forward_padded(bs, n_agents, n_enemies, n_heads, rnn_hidden_dim,
                                  embedding, hyper_enemy_out, hidden_state, params):
    """Returns padded, lane-dense outputs: q_pad (B_pad, WQ) f32, hh_pad (B_pad, H) f32.

    Lanes [0, A) hold the normal-action Qs and [A, A+E) the attack Qs; perf-conscious
    consumers should read this layout directly (slicing it back is an extra HBM pass).
    """
    B = bs * n_agents
    H = rnn_hidden_dim
    K = n_heads
    E = n_enemies
    A = params["w_fc2"].shape[0]
    WQ = max(128, _round_up(A + E, 128))
    f32, bf16 = jnp.float32, jnp.bfloat16

    h_in = hidden_state.reshape(-1, H).astype(f32)
    # ReLU done here: it fuses for free into the concat/cast below (no in-kernel iota/where).
    x = jnp.maximum(embedding.astype(f32), 0.0)
    xh = jnp.concatenate([x, h_in], axis=-1).astype(bf16)                     # (B, 2H)

    # fused GRU weight (2H, 4H): columns = [r | z | n_x | n_h]  (PyTorch gate order r,z,n)
    w_ih_t = params["w_ih"].T.astype(f32)                                     # (H, 3H)
    w_hh_t = params["w_hh"].T.astype(f32)
    zH = jnp.zeros((H, H), f32)
    top = jnp.concatenate([w_ih_t[:, :H], w_ih_t[:, H:2 * H], w_ih_t[:, 2 * H:], zH], axis=-1)
    bot = jnp.concatenate([w_hh_t[:, :H], w_hh_t[:, H:2 * H], zH, w_hh_t[:, 2 * H:]], axis=-1)
    w_gru = jnp.concatenate([top, bot], axis=0).astype(bf16)                  # (2H, 4H)
    b_ih, b_hh = params["b_ih"].astype(f32), params["b_hh"].astype(f32)
    b_gru = jnp.concatenate([b_ih[:H] + b_hh[:H],
                             b_ih[H:2 * H] + b_hh[H:2 * H],
                             b_ih[2 * H:], b_hh[2 * H:]]).reshape(1, 4 * H)

    # fc2 weight/bias zero-padded to WQ lanes -> unmasked lane-dense output store
    w_fc2 = jnp.zeros((H, WQ), f32).at[:, :A].set(params["w_fc2"].T).astype(bf16)
    b_fc2 = jnp.zeros((1, WQ), f32).at[0, :A].set(params["b_fc2"])

    # Fold the Merger softmax over heads into the hyper-generated attack params and
    # flatten to a lane-dense (B, E*H) layout (a multiple of 128 lanes for H=64, E=4).
    sm = jax.nn.softmax(params["merger_w"].reshape(K).astype(f32))
    w_tail = hyper_enemy_out[:, -(H + 1) * K:-K].reshape(B, E, H, K)
    b_tail = hyper_enemy_out[:, -K:].reshape(B, E, K)
    w_att = jnp.einsum("behk,k->beh", w_tail, sm).reshape(B, E * H).astype(bf16)
    b_att = jnp.einsum("bek,k->be", b_tail, sm).astype(f32)                   # (B, E)

    # fused reduction + placement matrices (0/1 entries: exactly representable in bf16)
    rows = jnp.arange(E * H)
    p2 = jnp.zeros((E * H, WQ), f32).at[rows, A + rows // H].set(1.0).astype(bf16)
    pb = jnp.zeros((E, WQ), f32).at[jnp.arange(E), A + jnp.arange(E)].set(1.0).astype(bf16)

    # ---- batch tiling: VMEM-derived block size, B zero-padded to a multiple of 8 ----
    per_row_bytes = ((2 * H) * 2      # xh bf16
                     + H * 4          # h f32
                     + (E * H) * 2    # w_att bf16 (dominant streamed tensor)
                     + 128 * 4        # b_att f32 (lane-padded in VMEM)
                     + WQ * 4         # q f32
                     + H * 4)         # hh f32
    TB, B_pad = _choose_tiling(B, per_row_bytes)

    xh_p = _pad_rows(xh, B_pad)
    h_p = _pad_rows(h_in, B_pad)
    w_att_p = _pad_rows(w_att, B_pad)
    b_att_p = _pad_rows(b_att, B_pad)

    grid = (B_pad // TB,)
    row = lambda i: (i, 0)
    full = lambda i: (0, 0)

    in_specs = [
        pl.BlockSpec((TB, 2 * H), row),        # xh
        pl.BlockSpec((TB, H), row),            # h_in (aliased to hh output)
        pl.BlockSpec((2 * H, 4 * H), full),    # w_gru (resident)
        pl.BlockSpec((1, 4 * H), full),        # b_gru
        pl.BlockSpec((H, WQ), full),           # w_fc2
        pl.BlockSpec((1, WQ), full),           # b_fc2
        pl.BlockSpec((TB, E * H), row),        # w_att (lane-dense, dominant DMA stream)
        pl.BlockSpec((TB, E), row),            # b_att
        pl.BlockSpec((E * H, WQ), full),       # p2 (fused reduce + placement)
        pl.BlockSpec((E, WQ), full),           # pb (bias placement)
    ]
    out_specs = (
        pl.BlockSpec((TB, H), row),            # hh
        pl.BlockSpec((TB, WQ), row),           # q (padded to 128 lanes)
    )

    hh_pad, q_pad = pl.pallas_call(
        tree_rnn_agent_kernel,
        out_shape=(jax.ShapeDtypeStruct((B_pad, H), f32),
                   jax.ShapeDtypeStruct((B_pad, WQ), f32)),
        grid=grid,
        in_specs=in_specs,
        out_specs=out_specs,
        input_output_aliases={1: 0},           # hidden state updated in place
        compiler_params=pltpu.CompilerParams(
            dimension_semantics=("parallel",),
            vmem_limit_bytes=VMEM_LIMIT_BYTES),
    )(xh_p, h_p, w_gru, b_gru, w_fc2, b_fc2, w_att_p, b_att_p, p2, pb)

    return q_pad, hh_pad


def tree_rnn_agent_forward(bs, n_agents, n_enemies, n_heads, rnn_hidden_dim,
                           embedding, hyper_enemy_out, hidden_state, params):
    """Module-shaped outputs: q (bs, n_agents, A+E), hh (bs, n_agents, H)."""
    B = bs * n_agents
    A = params["w_fc2"].shape[0]
    q_pad, hh_pad = tree_rnn_agent_forward_padded(
        bs, n_agents, n_enemies, n_heads, rnn_hidden_dim,
        embedding, hyper_enemy_out, hidden_state, params)
    q = q_pad[:B, :A + n_enemies].reshape(bs, n_agents, A + n_enemies)
    hh = hh_pad[:B].reshape(bs, n_agents, rnn_hidden_dim)
    return q, hh


def reference_forward(bs, n_agents, n_enemies, n_heads, H,
                      embedding, hyper_enemy_out, hidden_state, params):
    # Plain-JAX (f32) transcription of the PyTorch forward (non-MMM branch).
    B = bs * n_agents
    K = n_heads
    x = jnp.maximum(embedding, 0.0)
    h = hidden_state.reshape(-1, H)
    gx = x @ params["w_ih"].T + params["b_ih"]
    gh = h @ params["w_hh"].T + params["b_hh"]
    r = jax.nn.sigmoid(gx[:, :H] + gh[:, :H])
    z = jax.nn.sigmoid(gx[:, H:2 * H] + gh[:, H:2 * H])
    n = jnp.tanh(gx[:, 2 * H:] + r * gh[:, 2 * H:])
    hh = (1.0 - z) * n + z * h
    q_normal = (hh @ params["w_fc2"].T + params["b_fc2"]).reshape(bs, n_agents, -1)
    w_at = hyper_enemy_out[:, -(H + 1) * K:-K].reshape(B, n_enemies, H, K)
    w_at = jnp.transpose(w_at, (0, 2, 1, 3)).reshape(B, H, n_enemies * K)
    b_at = hyper_enemy_out[:, -K:].reshape(B, n_enemies * K)
    q_at = jnp.einsum("bh,bhe->be", hh, w_at) + b_at
    sm = jax.nn.softmax(params["merger_w"].reshape(K), axis=-1)
    q_attack = (q_at.reshape(B * n_enemies, K) * sm[None, :]).sum(-1)
    q_attack = q_attack.reshape(bs, n_agents, n_enemies)
    q = jnp.concatenate([q_normal, q_attack], axis=-1)
    return q, hh.reshape(bs, n_agents, H)


if __name__ == "__main__":
    # Small dims consistent with the module: n_agents=3, n_enemies=4, hpn_head_num=2,
    # rnn_hidden_dim=64, output_normal_actions=6, map_type != 'MMM'.
    bs, n_agents, n_enemies, n_heads = 2, 3, 4, 2
    H = 64
    out_normal = 6
    B = bs * n_agents
    hyper_dim = 8 + (H + 1) * n_heads   # forward only slices the (H+1)*K tail

    key = jax.random.PRNGKey(0)
    ks = jax.random.split(key, 9)
    params = {
        "w_ih": 0.1 * jax.random.normal(ks[0], (3 * H, H), jnp.float32),
        "b_ih": 0.1 * jax.random.normal(ks[1], (3 * H,), jnp.float32),
        "w_hh": 0.1 * jax.random.normal(ks[2], (3 * H, H), jnp.float32),
        "b_hh": 0.1 * jax.random.normal(ks[3], (3 * H,), jnp.float32),
        "w_fc2": 0.1 * jax.random.normal(ks[4], (out_normal, H), jnp.float32),
        "b_fc2": 0.1 * jax.random.normal(ks[5], (out_normal,), jnp.float32),
        # PyTorch Merger init: Parameter(Tensor(1, head, 1).fill_(1.))
        "merger_w": jnp.ones((1, n_heads, 1), jnp.float32),
    }
    embedding = jax.random.normal(ks[6], (B, H), jnp.float32)
    hyper_enemy_out = 0.1 * jax.random.normal(ks[7], (B * n_enemies, hyper_dim),
                                              jnp.float32)
    hidden_state = jax.random.normal(ks[8], (bs, n_agents, H), jnp.float32)

    # reference (f32) first
    q_r, hh_r = reference_forward(bs, n_agents, n_enemies, n_heads, H,
                                  embedding, hyper_enemy_out, hidden_state, params)

    q, hh = tree_rnn_agent_forward(bs, n_agents, n_enemies, n_heads, H,
                                   embedding, hyper_enemy_out, hidden_state, params)
    q = jax.block_until_ready(q)
    hh = jax.block_until_ready(hh)

    assert q.shape == (bs, n_agents, out_normal + n_enemies), q.shape
    assert hh.shape == (bs, n_agents, H), hh.shape
    # bf16 MXU operands => slightly looser tolerance than pure f32
    assert jnp.allclose(q, q_r, atol=2e-2, rtol=2e-2), "q mismatch vs reference"
    assert jnp.allclose(hh, hh_r, atol=2e-2, rtol=2e-2), "hh mismatch vs reference"

    # Multi-step rollout: check bf16 drift stays bounded across recurrent steps.
    hs_k, hs_r = hidden_state, hidden_state
    for _ in range(3):
        q_k, hs_k = tree_rnn_agent_forward(bs, n_agents, n_enemies, n_heads, H,
                                           embedding, hyper_enemy_out, hs_k, params)
        q_rr, hs_r = reference_forward(bs, n_agents, n_enemies, n_heads, H,
                                       embedding, hyper_enemy_out, hs_r, params)
    hs_k = jax.block_until_ready(hs_k)
    assert jnp.allclose(hs_k, hs_r, atol=5e-2, rtol=5e-2), "hh rollout drift too large"
    assert jnp.allclose(q_k, q_rr, atol=5e-2, rtol=5e-2), "q rollout drift too large"

    print("KERNEL_OK")
</pallas_src>

<mosaic_0001>
module attributes {stable_mosaic.version = 11 : i64} {
  func.func @tree_rnn_agent_kernel(%arg0: i32, %arg1: memref<8x128xbf16, #tpu.memory_space<vmem>>, %arg2: memref<8x64xf32, #tpu.memory_space<vmem>>, %arg3: memref<128x256xbf16, #tpu.memory_space<vmem>>, %arg4: memref<1x256xf32, #tpu.memory_space<vmem>>, %arg5: memref<64x128xbf16, #tpu.memory_space<vmem>>, %arg6: memref<1x128xf32, #tpu.memory_space<vmem>>, %arg7: memref<8x256xbf16, #tpu.memory_space<vmem>>, %arg8: memref<8x4xf32, #tpu.memory_space<vmem>>, %arg9: memref<256x128xbf16, #tpu.memory_space<vmem>>, %arg10: memref<4x128xbf16, #tpu.memory_space<vmem>>, %arg11: memref<8x64xf32, #tpu.memory_space<vmem>>, %arg12: memref<8x128xf32, #tpu.memory_space<vmem>>) attributes {dimension_semantics = [#tpu.dimension_semantics<parallel>], iteration_bounds = array<i64: 1>, scalar_prefetch = 0 : i64, scratch_operands = 0 : i64, tpu.core_type = #tpu.core_type<tc>, window_params = [{transform_indices = @transform_0, window_bounds = array<i64: 8, 128>}, {transform_indices = @transform_1, window_bounds = array<i64: 8, 64>}, {pipeline_mode = #tpu.pipeline_mode<synchronous>, transform_indices = @transform_2, window_bounds = array<i64: 128, 256>}, {pipeline_mode = #tpu.pipeline_mode<synchronous>, transform_indices = @transform_3, window_bounds = array<i64: 1, 256>}, {pipeline_mode = #tpu.pipeline_mode<synchronous>, transform_indices = @transform_4, window_bounds = array<i64: 64, 128>}, {pipeline_mode = #tpu.pipeline_mode<synchronous>, transform_indices = @transform_5, window_bounds = array<i64: 1, 128>}, {transform_indices = @transform_6, window_bounds = array<i64: 8, 256>}, {transform_indices = @transform_7, window_bounds = array<i64: 8, 4>}, {pipeline_mode = #tpu.pipeline_mode<synchronous>, transform_indices = @transform_8, window_bounds = array<i64: 256, 128>}, {pipeline_mode = #tpu.pipeline_mode<synchronous>, transform_indices = @transform_9, window_bounds = array<i64: 4, 128>}, {transform_indices = @transform_10, window_bounds = array<i64: 8, 64>}, {transform_indices = @transform_11, window_bounds = array<i64: 8, 128>}]} {
    %c0 = arith.constant 0 : index
    %c0_0 = arith.constant 0 : index
    %0 = vector.load %arg1[%c0, %c0_0] : memref<8x128xbf16, #tpu.memory_space<vmem>>, vector<8x128xbf16>
    %c0_1 = arith.constant 0 : index
    %c0_2 = arith.constant 0 : index
    %1 = vector.load %arg3[%c0_1, %c0_2] : memref<128x256xbf16, #tpu.memory_space<vmem>>, vector<128x256xbf16>
    %cst = arith.constant dense<0.000000e+00> : vector<8x256xf32>
    %2 = tpu.matmul %0, %1, %cst {dimension_numbers = #tpu.dot_dimension_numbers<[1], [0], [0], [1], [0, 0, 1, 1], [], []>} : vector<8x128xbf16>, vector<128x256xbf16>, vector<8x256xf32> -> vector<8x256xf32>
    %c0_3 = arith.constant 0 : index
    %c0_4 = arith.constant 0 : index
    %3 = vector.load %arg4[%c0_3, %c0_4] : memref<1x256xf32, #tpu.memory_space<vmem>>, vector<1x256xf32>
    %4 = vector.broadcast %3 : vector<1x256xf32> to vector<8x256xf32>
    %5 = arith.addf %2, %4 : vector<8x256xf32>
    %c0_5 = arith.constant 0 : index
    %c0_6 = arith.constant 0 : index
    %6 = vector.load %arg2[%c0_5, %c0_6] : memref<8x64xf32, #tpu.memory_space<vmem>>, vector<8x64xf32>
    %7 = vector.extract_strided_slice %5 {offsets = [0, 0], sizes = [8, 64], strides = [1, 1]} : vector<8x256xf32> to vector<8x64xf32>
    %8 = arith.negf %7 : vector<8x64xf32>
    %9 = math.exp %8 : vector<8x64xf32>
    %cst_7 = arith.constant 1.000000e+00 : f32
    %10 = vector.broadcast %cst_7 : f32 to vector<8x64xf32>
    %11 = arith.addf %10, %9 : vector<8x64xf32>
    %12 = arith.divf %10, %11 : vector<8x64xf32>
    %13 = vector.extract_strided_slice %5 {offsets = [0, 64], sizes = [8, 64], strides = [1, 1]} : vector<8x256xf32> to vector<8x64xf32>
    %14 = arith.negf %13 : vector<8x64xf32>
    %15 = math.exp %14 : vector<8x64xf32>
    %cst_8 = arith.constant 1.000000e+00 : f32
    %16 = vector.broadcast %cst_8 : f32 to vector<8x64xf32>
    %17 = arith.addf %16, %15 : vector<8x64xf32>
    %18 = arith.divf %16, %17 : vector<8x64xf32>
    %19 = vector.extract_strided_slice %5 {offsets = [0, 128], sizes = [8, 64], strides = [1, 1]} : vector<8x256xf32> to vector<8x64xf32>
    %20 = vector.extract_strided_slice %5 {offsets = [0, 192], sizes = [8, 64], strides = [1, 1]} : vector<8x256xf32> to vector<8x64xf32>
    %21 = arith.mulf %12, %20 : vector<8x64xf32>
    %22 = arith.addf %19, %21 : vector<8x64xf32>
    %23 = math.tanh %22 : vector<8x64xf32>
    %cst_9 = arith.constant 1.000000e+00 : f32
    %24 = vector.broadcast %cst_9 : f32 to vector<8x64xf32>
    %25 = arith.subf %24, %18 : vector<8x64xf32>
    %26 = arith.mulf %25, %23 : vector<8x64xf32>
    %27 = arith.mulf %18, %6 : vector<8x64xf32>
    %28 = arith.addf %26, %27 : vector<8x64xf32>
    %c0_10 = arith.constant 0 : index
    %c0_11 = arith.constant 0 : index
    %29 = vector.load %arg11[%c0_10, %c0_11] : memref<8x64xf32, #tpu.memory_space<vmem>>, vector<8x64xf32>
    tpu.vector_store %arg11[%c0_10, %c0_11], %28 {strides = array<i32>} : memref<8x64xf32, #tpu.memory_space<vmem>>, vector<8x64xf32>,
    %30 = arith.truncf %28 : vector<8x64xf32> to vector<8x64xbf16>
    %c0_12 = arith.constant 0 : index
    %c0_13 = arith.constant 0 : index
    %31 = vector.load %arg5[%c0_12, %c0_13] : memref<64x128xbf16, #tpu.memory_space<vmem>>, vector<64x128xbf16>
    %cst_14 = arith.constant dense<0.000000e+00> : vector<8x128xf32>
    %32 = tpu.matmul %30, %31, %cst_14 {dimension_numbers = #tpu.dot_dimension_numbers<[1], [0], [0], [1], [0, 0, 1, 1], [], []>} : vector<8x64xbf16>, vector<64x128xbf16>, vector<8x128xf32> -> vector<8x128xf32>
    %c0_15 = arith.constant 0 : index
    %c0_16 = arith.constant 0 : index
    %33 = vector.load %arg6[%c0_15, %c0_16] : memref<1x128xf32, #tpu.memory_space<vmem>>, vector<1x128xf32>
    %34 = vector.broadcast %33 : vector<1x128xf32> to vector<8x128xf32>
    %35 = arith.addf %32, %34 : vector<8x128xf32>
    %36 = tpu.concatenate %30, %30, %30, %30 in 1 : vector<8x64xbf16>, vector<8x64xbf16>, vector<8x64xbf16>, vector<8x64xbf16> -> vector<8x256xbf16>
    %c0_17 = arith.constant 0 : index
    %c0_18 = arith.constant 0 : index
    %37 = vector.load %arg7[%c0_17, %c0_18] : memref<8x256xbf16, #tpu.memory_space<vmem>>, vector<8x256xbf16>
    %38 = arith.mulf %36, %37 : vector<8x256xbf16>
    %c0_19 = arith.constant 0 : index
    %c0_20 = arith.constant 0 : index
    %39 = vector.load %arg9[%c0_19, %c0_20] : memref<256x128xbf16, #tpu.memory_space<vmem>>, vector<256x128xbf16>
    %cst_21 = arith.constant dense<0.000000e+00> : vector<8x128xf32>
    %40 = tpu.matmul %38, %39, %cst_21 {dimension_numbers = #tpu.dot_dimension_numbers<[1], [0], [0], [1], [0, 0, 1, 1], [], []>} : vector<8x256xbf16>, vector<256x128xbf16>, vector<8x128xf32> -> vector<8x128xf32>
    %41 = arith.addf %35, %40 : vector<8x128xf32>
    %c0_22 = arith.constant 0 : index
    %c0_23 = arith.constant 0 : index
    %42 = vector.load %arg8[%c0_22, %c0_23] : memref<8x4xf32, #tpu.memory_space<vmem>>, vector<8x4xf32>
    %43 = arith.truncf %42 : vector<8x4xf32> to vector<8x4xbf16>
    %c0_24 = arith.constant 0 : index
    %c0_25 = arith.constant 0 : index
    %44 = vector.load %arg10[%c0_24, %c0_25] : memref<4x128xbf16, #tpu.memory_space<vmem>>, vector<4x128xbf16>
    %cst_26 = arith.constant dense<0.000000e+00> : vector<8x128xf32>
    %45 = tpu.matmul %43, %44, %cst_26 {dimension_numbers = #tpu.dot_dimension_numbers<[1], [0], [0], [1], [0, 0, 1, 1], [], []>} : vector<8x4xbf16>, vector<4x128xbf16>, vector<8x128xf32> -> vector<8x128xf32>
    %46 = arith.addf %41, %45 : vector<8x128xf32>
    %c0_27 = arith.constant 0 : index
    %c0_28 = arith.constant 0 : index
    %47 = vector.load %arg12[%c0_27, %c0_28] : memref<8x128xf32, #tpu.memory_space<vmem>>, vector<8x128xf32>
    tpu.vector_store %arg12[%c0_27, %c0_28], %46 {strides = array<i32>} : memref<8x128xf32, #tpu.memory_space<vmem>>, vector<8x128xf32>,
    return
  }
  func.func @transform_0(%arg0: i32) -> (i32, i32) {
    %c0_i32 = arith.constant 0 : i32
    %c0_i32_0 = arith.constant 0 : i32
    return %arg0, %c0_i32 : i32, i32
  }
  func.func @transform_1(%arg0: i32) -> (i32, i32) {
    %c0_i32 = arith.constant 0 : i32
    %c0_i32_0 = arith.constant 0 : i32
    return %arg0, %c0_i32 : i32, i32
  }
  func.func @transform_2(%arg0: i32) -> (i32, i32) {
    %c0_i32 = arith.constant 0 : i32
    %c0_i32_0 = arith.constant 0 : i32
    %c0_i32_1 = arith.constant 0 : i32
    return %c0_i32, %c0_i32_0 : i32, i32
  }
  func.func @transform_3(%arg0: i32) -> (i32, i32) {
    %c0_i32 = arith.constant 0 : i32
    %c0_i32_0 = arith.constant 0 : i32
    %c0_i32_1 = arith.constant 0 : i32
    return %c0_i32, %c0_i32_0 : i32, i32
  }
  func.func @transform_4(%arg0: i32) -> (i32, i32) {
    %c0_i32 = arith.constant 0 : i32
    %c0_i32_0 = arith.constant 0 : i32
    %c0_i32_1 = arith.constant 0 : i32
    return %c0_i32, %c0_i32_0 : i32, i32
  }
  func.func @transform_5(%arg0: i32) -> (i32, i32) {
    %c0_i32 = arith.constant 0 : i32
    %c0_i32_0 = arith.constant 0 : i32
    %c0_i32_1 = arith.constant 0 : i32
    return %c0_i32, %c0_i32_0 : i32, i32
  }
  func.func @transform_6(%arg0: i32) -> (i32, i32) {
    %c0_i32 = arith.constant 0 : i32
    %c0_i32_0 = arith.constant 0 : i32
    return %arg0, %c0_i32 : i32, i32
  }
  func.func @transform_7(%arg0: i32) -> (i32, i32) {
    %c0_i32 = arith.constant 0 : i32
    %c0_i32_0 = arith.constant 0 : i32
    return %arg0, %c0_i32 : i32, i32
  }
  func.func @transform_8(%arg0: i32) -> (i32, i32) {
    %c0_i32 = arith.constant 0 : i32
    %c0_i32_0 = arith.constant 0 : i32
    %c0_i32_1 = arith.constant 0 : i32
    return %c0_i32, %c0_i32_0 : i32, i32
  }
  func.func @transform_9(%arg0: i32) -> (i32, i32) {
    %c0_i32 = arith.constant 0 : i32
    %c0_i32_0 = arith.constant 0 : i32
    %c0_i32_1 = arith.constant 0 : i32
    return %c0_i32, %c0_i32_0 : i32, i32
  }
  func.func @transform_10(%arg0: i32) -> (i32, i32) {
    %c0_i32 = arith.constant 0 : i32
    %c0_i32_0 = arith.constant 0 : i32
    return %arg0, %c0_i32 : i32, i32
  }
  func.func @transform_11(%arg0: i32) -> (i32, i32) {
    %c0_i32 = arith.constant 0 : i32
    %c0_i32_0 = arith.constant 0 : i32
    return %arg0, %c0_i32 : i32, i32
  }
}

</mosaic_0001>

<llo_original>
// kernel: tree_rnn_agent_forward_padded.1
$region0: #{tree_rnn_agent_forward_padded.1}
  #allocation0 [shape = 'u32[]', space=smem, size = 0x4, offset = 0x4, fixed_abs, tag = 'smem constant byte address 0x4 - core index']
  #allocation1 [shape = 'u32[144,128]{1,0:T(1,128)}', space=vmem, size = 0x12000, scoped, tag = 'internal scratch']
  %s0 = inlined_call_operand.vmem [shape: bf16[8,128], index: 0, kind: input, shape index: {}]
  %s1 = inlined_call_operand.vmem [shape: f32[8,64], index: 1, kind: input, shape index: {}, may-alias: {1,10}]
  %s2 = inlined_call_operand.vmem [shape: bf16[128,256], index: 2, kind: input, shape index: {}]
  %s3 = inlined_call_operand.vmem [shape: f32[1,256], index: 3, kind: input, shape index: {}]
  %s4 = inlined_call_operand.vmem [shape: bf16[64,128], index: 4, kind: input, shape index: {}]
  %s5 = inlined_call_operand.vmem [shape: f32[1,128], index: 5, kind: input, shape index: {}]
  %s6 = inlined_call_operand.vmem [shape: bf16[8,256], index: 6, kind: input, shape index: {}]
  %s7 = inlined_call_operand.vmem [shape: f32[8,4], index: 7, kind: input, shape index: {}]
  %s8 = inlined_call_operand.vmem [shape: bf16[256,128], index: 8, kind: input, shape index: {}]
  %s9 = inlined_call_operand.vmem [shape: bf16[4,128], index: 9, kind: input, shape index: {}]
  %s10 = inlined_call_operand.vmem [shape: f32[8,64], index: 10, kind: output, shape index: {0}, may-alias: {1,10}]
  %s11 = inlined_call_operand.hbm [shape: f32[8,128], index: 11, kind: output, shape index: {1}]
  %12 = xla_tuple %s10, %s11
  %s13 = sld [smem:[#allocation0]]
  $region58: #{tree_rnn_agent_forward_padded.1} parent=0
    _
  %s15 = ssub.s32 1, %s13
  %s16 = scalar_select 0, %s15, %s13
  $region1: #{tree_rnn_agent_forward_padded.1} parent=0
    #allocation2 [shape = 'u8[4096]{0}', space=vmem, size = 0x1000, scoped, tag = 'output window, operand 1, single buffered']
    #allocation3 [shape = 's32[1]{0}', space=sflag, size = 0x4, scoped, tag = 'scoped memory for tree_rnn_agent_forward_padded.1']
    %17 = vsyncpa [#allocation3], 0
    // Predicated region
    $region2: #{tree_rnn_agent_forward_padded.1} parent=1 // pred_check
      _
    $region3: #{tree_rnn_agent_forward_padded.1} parent=1 // pred_check_branch
      %19 = sbr.rel (0) target = $region5
    $region4: #{tree_rnn_agent_forward_padded.1} parent=1 // pred_region
      _
    $region5: #{tree_rnn_agent_forward_padded.1} parent=1 // pred_fallthru
      _
    // Predicated region
    $region6: #{tree_rnn_agent_forward_padded.1} parent=1 // pred_check
      _
    $region7: #{tree_rnn_agent_forward_padded.1} parent=1 // pred_check_branch
      %21 = sbr.rel (0) target = $region9
    $region8: #{tree_rnn_agent_forward_padded.1} parent=1 // pred_region
      _
    $region9: #{tree_rnn_agent_forward_padded.1} parent=1 // pred_fallthru
      _
    // Predicated region
    $region10: #{tree_rnn_agent_forward_padded.1} parent=1 // pred_check
      _
    $region11: #{tree_rnn_agent_forward_padded.1} parent=1 // pred_check_branch
      %23 = sbr.rel (0) target = $region13
    $region12: #{tree_rnn_agent_forward_padded.1} parent=1 // pred_region
      _
    $region13: #{tree_rnn_agent_forward_padded.1} parent=1 // pred_fallthru
      _
    // Predicated region
    $region14: #{tree_rnn_agent_forward_padded.1} parent=1 // pred_check
      _
    $region15: #{tree_rnn_agent_forward_padded.1} parent=1 // pred_check_branch
      %25 = sbr.rel (0) target = $region17
    $region16: #{tree_rnn_agent_forward_padded.1} parent=1 // pred_region
      _
    $region17: #{tree_rnn_agent_forward_padded.1} parent=1 // pred_fallthru
      _
    // Predicated region
    $region18: #{tree_rnn_agent_forward_padded.1} parent=1 // pred_check
      _
    $region19: #{tree_rnn_agent_forward_padded.1} parent=1 // pred_check_branch
      %27 = sbr.rel (0) target = $region21
    $region20: #{tree_rnn_agent_forward_padded.1} parent=1 // pred_region
      _
    $region21: #{tree_rnn_agent_forward_padded.1} parent=1 // pred_fallthru
      _
    // Predicated region
    $region22: #{tree_rnn_agent_forward_padded.1} parent=1 // pred_check
      _
    $region23: #{tree_rnn_agent_forward_padded.1} parent=1 // pred_check_branch
      %29 = sbr.rel (0) target = $region25
    $region24: #{tree_rnn_agent_forward_padded.1} parent=1 // pred_region
      _
    $region25: #{tree_rnn_agent_forward_padded.1} parent=1 // pred_fallthru
      _
    // Predicated region
    $region26: #{tree_rnn_agent_forward_padded.1} parent=1 // pred_check
      _
    $region27: #{tree_rnn_agent_forward_padded.1} parent=1 // pred_check_branch
      %31 = sbr.rel (0) target = $region29
    $region28: #{tree_rnn_agent_forward_padded.1} parent=1 // pred_region
      _
    $region29: #{tree_rnn_agent_forward_padded.1} parent=1 // pred_fallthru
      _
    // Predicated region
    $region30: #{tree_rnn_agent_forward_padded.1} parent=1 // pred_check
      _
    $region31: #{tree_rnn_agent_forward_padded.1} parent=1 // pred_check_branch
      %33 = sbr.rel (0) target = $region33
    $region32: #{tree_rnn_agent_forward_padded.1} parent=1 // pred_region
      _
    $region33: #{tree_rnn_agent_forward_padded.1} parent=1 // pred_fallthru
      _
    // Predicated region
    $region34: #{tree_rnn_agent_forward_padded.1} parent=1 // pred_check
      _
    $region35: #{tree_rnn_agent_forward_padded.1} parent=1 // pred_check_branch
      %35 = sbr.rel (0) target = $region37
    $region36: #{tree_rnn_agent_forward_padded.1} parent=1 // pred_region
      _
    $region37: #{tree_rnn_agent_forward_padded.1} parent=1 // pred_fallthru
      _
    // Predicated region
    $region38: #{tree_rnn_agent_forward_padded.1} parent=1 // pred_check
      _
    $region39: #{tree_rnn_agent_forward_padded.1} parent=1 // pred_check_branch
      %37 = sbr.rel (0) target = $region41
    $region40: #{tree_rnn_agent_forward_padded.1} parent=1 // pred_region
      _
    $region41: #{tree_rnn_agent_forward_padded.1} parent=1 // pred_fallthru
      _
    %v39 = vld [vmem:[%s0] sm:$0xf]
    %v40 = vld [vmem:[%s2] sm:$0xff]
    %v41 = vld [vmem:[%s2 + $0x8] sm:$0xff]
    %v42 = vld [vmem:[%s2 + $0x10] sm:$0xff]
    %v43 = vld [vmem:[%s2 + $0x18] sm:$0xff]
    %v44 = vld [vmem:[%s2 + $0x20] sm:$0xff]
    %v45 = vld [vmem:[%s2 + $0x28] sm:$0xff]
    %v46 = vld [vmem:[%s2 + $0x30] sm:$0xff]
    %v47 = vld [vmem:[%s2 + $0x38] sm:$0xff]
    %v48 = vld [vmem:[%s2 + $0x40] sm:$0xff]
    %v49 = vld [vmem:[%s2 + $0x48] sm:$0xff]
    %v50 = vld [vmem:[%s2 + $0x50] sm:$0xff]
    %v51 = vld [vmem:[%s2 + $0x58] sm:$0xff]
    %v52 = vld [vmem:[%s2 + $0x60] sm:$0xff]
    %v53 = vld [vmem:[%s2 + $0x68] sm:$0xff]
    %v54 = vld [vmem:[%s2 + $0x70] sm:$0xff]
    %v55 = vld [vmem:[%s2 + $0x78] sm:$0xff]
    %v56 = vld [vmem:[%s3] sm:$0x3]
    %v58 = vlaneseq
    %v59 = vshrl.u32 %v58, 7
    %v60 = vsub.s32 0, %v59
    %v61 = vrot.slane %v56, %v60
    %v62 = vlaneseq
    %v63 = vshrl.u32 %v62, 7
    %v64 = vsub.s32 1, %v63
    %v65 = vrot.slane %v56, %v64
    %v84 = vunpack.c.l.b16 %v40
    %v85 = vunpack.c.h.b16 %v40
    %v86 = vunpack.c.l.b16 %v41
    %v87 = vunpack.c.h.b16 %v41
    %v88 = vunpack.c.l.b16 %v42
    %v89 = vunpack.c.h.b16 %v42
    %v90 = vunpack.c.l.b16 %v43
    %v91 = vunpack.c.h.b16 %v43
    %v92 = vunpack.c.l.b16 %v44
    %v93 = vunpack.c.h.b16 %v44
    %v94 = vunpack.c.l.b16 %v45
    %v95 = vunpack.c.h.b16 %v45
    %v96 = vunpack.c.l.b16 %v46
    %v97 = vunpack.c.h.b16 %v46
    %v98 = vunpack.c.l.b16 %v47
    %v99 = vunpack.c.h.b16 %v47
    %v100 = vunpack.c.l.b16 %v48
    %v101 = vunpack.c.h.b16 %v48
    %v102 = vunpack.c.l.b16 %v49
    %v103 = vunpack.c.h.b16 %v49
    %v104 = vunpack.c.l.b16 %v50
    %v105 = vunpack.c.h.b16 %v50
    %v106 = vunpack.c.l.b16 %v51
    %v107 = vunpack.c.h.b16 %v51
    %v108 = vunpack.c.l.b16 %v52
    %v109 = vunpack.c.h.b16 %v52
    %v110 = vunpack.c.l.b16 %v53
    %v111 = vunpack.c.h.b16 %v53
    %v112 = vunpack.c.l.b16 %v54
    %v113 = vunpack.c.h.b16 %v54
    %v114 = vunpack.c.l.b16 %v55
    %v115 = vunpack.c.h.b16 %v55
    %v116 = vpack.c.b16 %v86, %v84
    %v117 = vpack.c.b16 %v87, %v85
    %v118 = vpack.c.b16 %v90, %v88
    %v119 = vpack.c.b16 %v91, %v89
    %v120 = vpack.c.b16 %v94, %v92
    %v121 = vpack.c.b16 %v95, %v93
    %v122 = vpack.c.b16 %v98, %v96
    %v123 = vpack.c.b16 %v99, %v97
    %v124 = vpack.c.b16 %v102, %v100
    %v125 = vpack.c.b16 %v103, %v101
    %v126 = vpack.c.b16 %v106, %v104
    %v127 = vpack.c.b16 %v107, %v105
    %v128 = vpack.c.b16 %v110, %v108
    %v129 = vpack.c.b16 %v111, %v109
    %v130 = vpack.c.b16 %v114, %v112
    %v131 = vpack.c.b16 %v115, %v113
    %148 = vmatprep.subr.bf16.mxu0 %v117
    %149 = vmatpush1.bf16.msra.mxu0 %v116
    %150 = vmatprep.subr.bf16.mxu0 %v119
    %151 = vmatpush1.bf16.msra.mxu0 %v118
    %152 = vmatprep.subr.bf16.mxu0 %v121
    %153 = vmatpush1.bf16.msra.mxu0 %v120
    %154 = vmatprep.subr.bf16.mxu0 %v123
    %155 = vmatpush1.bf16.msra.mxu0 %v122
    %156 = vmatprep.subr.bf16.mxu0 %v125
    %157 = vmatpush1.bf16.msra.mxu0 %v124
    %158 = vmatprep.subr.bf16.mxu0 %v127
    %159 = vmatpush1.bf16.msra.mxu0 %v126
    %160 = vmatprep.subr.bf16.mxu0 %v129
    %161 = vmatpush1.bf16.msra.mxu0 %v128
    %162 = vmatprep.subr.bf16.mxu0 %v131
    %163 = vmatpush1.bf16.msra.mxu0 %v130
    %164 = vmatprep.subr.bf16.mxu0 0
    %165 = vmatpush1.bf16.msra.mxu0 0
    %166 = vmatprep.subr.bf16.mxu0 0
    %167 = vmatpush1.bf16.msra.mxu0 0
    %168 = vmatprep.subr.bf16.mxu0 0
    %169 = vmatpush1.bf16.msra.mxu0 0
    %170 = vmatprep.subr.bf16.mxu0 0
    %171 = vmatpush1.bf16.msra.mxu0 0
    %172 = vmatprep.subr.bf16.mxu0 0
    %173 = vmatpush1.bf16.msra.mxu0 0
    %174 = vmatprep.subr.bf16.mxu0 0
    %175 = vmatpush1.bf16.msra.mxu0 0
    %176 = vmatprep.subr.bf16.mxu0 0
    %177 = vmatpush1.bf16.msra.mxu0 0
    %178 = vmatprep.subr.bf16.mxu0 0
    %179 = vmatpush1.bf16.msra.mxu0 0
    %180 = vmatprep.mubr.bf16.mxu0 0
    %181 = vmatmul.mubr.bf16.gmra.mrb[0].mxu0 %v39
    %v182 = vpop.f32.mrb[0].mxu0
    %v183 = vadd.f32 %v61, %v182
    %v184 = vpop.f32.mrb[0].mxu0
    %v185 = vadd.f32 %v65, %v184
    %v186 = vpop.f32.mrb[0].mxu0
    %v187 = vpop.f32.mrb[0].mxu0
    %188 = vdwg.mxu0
    %v189 = vld [vmem:[%s1] sm:$0xff]
    %v190 = vxor.u32 %v183, 2147483648
    %v191 = vmul.f32 %v190, 1.442695
    %v192 = vpow.pop %v191
    %v193 = vadd.f32 %v192, 1.0
    %v194 = vrcp.pop %v193
    %v195 = vmul.f32 1.0, %v194
    %197 = vrot.lane.b32.xlu0 %v185, 64
    %v198 = vpop.permute.xlu0 %197
    %v200 = vmul.f32 %v195, %v198
    %v201 = vadd.f32 %v185, %v200
    %v202 = vtanh.pop %v201
    %v203 = vsub.f32 1.0, %v195
    %205 = vrot.lane.b32.xlu0 %v202, 64
    %v206 = vpop.permute.xlu0 %205
    %v208 = vmul.f32 %v203, %v206
    %210 = vrot.lane.b32.xlu0 %v189, 64
    %v211 = vpop.permute.xlu0 %210
    %v213 = vmul.f32 %v195, %v211
    %v214 = vadd.f32 %v208, %v213
    %216 = vrot.lane.b32.xlu0 %v214, 64
    %v217 = vpop.permute.xlu0 %216
    %vm219 = vcmask 523264
    %220 = vst.msk [vmem:[%s10] sm:$0xff] %vm219, %v217
    %v221 = vpack.c.bf16 %v214, %v214
    %v222 = vld [vmem:[%s4] sm:$0xf]
    %v223 = vld [vmem:[%s4 + $0x4] sm:$0xf]
    %v224 = vld [vmem:[%s4 + $0x8] sm:$0xf]
    %v225 = vld [vmem:[%s4 + $0xc] sm:$0xf]
    %v226 = vld [vmem:[%s4 + $0x10] sm:$0xf]
    %v227 = vld [vmem:[%s4 + $0x14] sm:$0xf]
    %v228 = vld [vmem:[%s4 + $0x18] sm:$0xf]
    %v229 = vld [vmem:[%s4 + $0x1c] sm:$0xf]
    %v230 = vld [vmem:[%s5] sm:$0x1]
    %v232 = vlaneseq
    %v233 = vshrl.u32 %v232, 7
    %v234 = vsub.s32 0, %v233
    %v235 = vrot.slane %v230, %v234
    %238 = vrot.lane.b32.xlu0 %v221, 64
    %v239 = vpop.permute.xlu0 %238
    %v248 = vunpack.c.l.b16 %v222
    %v249 = vunpack.c.l.b16 %v223
    %v250 = vunpack.c.l.b16 %v224
    %v251 = vunpack.c.l.b16 %v225
    %v252 = vunpack.c.l.b16 %v226
    %v253 = vunpack.c.l.b16 %v227
    %v254 = vunpack.c.l.b16 %v228
    %v255 = vunpack.c.l.b16 %v229
    %v256 = vpack.c.b16 %v249, %v248
    %v257 = vpack.c.b16 %v251, %v250
    %v258 = vpack.c.b16 %v253, %v252
    %v259 = vpack.c.b16 %v255, %v254
    %v265 = vsel %vm219, %v239, 0
    %267 = vmatprep.subr.bf16.mxu0 0
    %268 = vmatpush1.bf16.msra.mxu0 %v256
    %269 = vmatprep.subr.bf16.mxu0 0
    %270 = vmatpush1.bf16.msra.mxu0 %v257
    %271 = vmatprep.subr.bf16.mxu0 0
    %272 = vmatpush1.bf16.msra.mxu0 %v258
    %273 = vmatprep.subr.bf16.mxu0 0
    %274 = vmatpush1.bf16.msra.mxu0 %v259
    %275 = vmatprep.subr.bf16.mxu0 0
    %276 = vmatpush1.bf16.msra.mxu0 0
    %277 = vmatprep.subr.bf16.mxu0 0
    %278 = vmatpush1.bf16.msra.mxu0 0
    %279 = vmatprep.subr.bf16.mxu0 0
    %280 = vmatpush1.bf16.msra.mxu0 0
    %281 = vmatprep.subr.bf16.mxu0 0
    %282 = vmatpush1.bf16.msra.mxu0 0
    %283 = vmatprep.subr.bf16.mxu0 0
    %284 = vmatpush1.bf16.msra.mxu0 0
    %285 = vmatprep.subr.bf16.mxu0 0
    %286 = vmatpush1.bf16.msra.mxu0 0
    %287 = vmatprep.subr.bf16.mxu0 0
    %288 = vmatpush1.bf16.msra.mxu0 0
    %289 = vmatprep.subr.bf16.mxu0 0
    %290 = vmatpush1.bf16.msra.mxu0 0
    %291 = vmatprep.subr.bf16.mxu0 0
    %292 = vmatpush1.bf16.msra.mxu0 0
    %293 = vmatprep.subr.bf16.mxu0 0
    %294 = vmatpush1.bf16.msra.mxu0 0
    %295 = vmatprep.subr.bf16.mxu0 0
    %296 = vmatpush1.bf16.msra.mxu0 0
    %297 = vmatprep.subr.bf16.mxu0 0
    %298 = vmatpush1.bf16.msra.mxu0 0
    %299 = vmatprep.mubr.bf16.mxu0 0
    %300 = vmatmul.mubr.bf16.gmra.mrb[0].mxu0 %v265
    %v301 = vpop.f32.mrb[0].mxu0
    %v302 = vadd.f32 %v235, %v301
    %v303 = vpop.f32.mrb[0].mxu0
    %v304 = vpop.f32.mrb[0].mxu0
    %v305 = vpop.f32.mrb[0].mxu0
    %306 = vdwg.mxu0
    %v308 = vsel %vm219, %v239, %v221
    %v310 = vld [vmem:[%s6] sm:$0xff]
    %v312 = vunpack.c.l.b16 %v310
    %v313 = vunpack.c.h.b16 %v310
    %v314 = vpack.c.b16 %v312, %v312
    %v315 = vpack.c.b16 %v313, %v313
    %v318 = vmul.bf16 %v308, %v314
    %v319 = vmul.bf16 %v308, %v315
    %v320 = vld [vmem:[%s8] sm:$0xf]
    %v321 = vld [vmem:[%s8 + $0x4] sm:$0xf]
    %v322 = vld [vmem:[%s8 + $0x8] sm:$0xf]
    %v323 = vld [vmem:[%s8 + $0xc] sm:$0xf]
    %v324 = vld [vmem:[%s8 + $0x10] sm:$0xf]
    %v325 = vld [vmem:[%s8 + $0x14] sm:$0xf]
    %v326 = vld [vmem:[%s8 + $0x18] sm:$0xf]
    %v327 = vld [vmem:[%s8 + $0x1c] sm:$0xf]
    %v328 = vld [vmem:[%s8 + $0x20] sm:$0xf]
    %v329 = vld [vmem:[%s8 + $0x24] sm:$0xf]
    %v330 = vld [vmem:[%s8 + $0x28] sm:$0xf]
    %v331 = vld [vmem:[%s8 + $0x2c] sm:$0xf]
    %v332 = vld [vmem:[%s8 + $0x30] sm:$0xf]
    %v333 = vld [vmem:[%s8 + $0x34] sm:$0xf]
    %v334 = vld [vmem:[%s8 + $0x38] sm:$0xf]
    %v335 = vld [vmem:[%s8 + $0x3c] sm:$0xf]
    %v336 = vld [vmem:[%s8 + $0x40] sm:$0xf]
    %v337 = vld [vmem:[%s8 + $0x44] sm:$0xf]
    %v338 = vld [vmem:[%s8 + $0x48] sm:$0xf]
    %v339 = vld [vmem:[%s8 + $0x4c] sm:$0xf]
    %v340 = vld [vmem:[%s8 + $0x50] sm:$0xf]
    %v341 = vld [vmem:[%s8 + $0x54] sm:$0xf]
    %v342 = vld [vmem:[%s8 + $0x58] sm:$0xf]
    %v343 = vld [vmem:[%s8 + $0x5c] sm:$0xf]
    %v344 = vld [vmem:[%s8 + $0x60] sm:$0xf]
    %v345 = vld [vmem:[%s8 + $0x64] sm:$0xf]
    %v346 = vld [vmem:[%s8 + $0x68] sm:$0xf]
    %v347 = vld [vmem:[%s8 + $0x6c] sm:$0xf]
    %v348 = vld [vmem:[%s8 + $0x70] sm:$0xf]
    %v349 = vld [vmem:[%s8 + $0x74] sm:$0xf]
    %v350 = vld [vmem:[%s8 + $0x78] sm:$0xf]
    %v351 = vld [vmem:[%s8 + $0x7c] sm:$0xf]
    %v384 = vunpack.c.l.b16 %v320
    %v385 = vunpack.c.l.b16 %v321
    %v386 = vunpack.c.l.b16 %v322
    %v387 = vunpack.c.l.b16 %v323
    %v388 = vunpack.c.l.b16 %v324
    %v389 = vunpack.c.l.b16 %v325
    %v390 = vunpack.c.l.b16 %v326
    %v391 = vunpack.c.l.b16 %v327
    %v392 = vunpack.c.l.b16 %v328
    %v393 = vunpack.c.l.b16 %v329
    %v394 = vunpack.c.l.b16 %v330
    %v395 = vunpack.c.l.b16 %v331
    %v396 = vunpack.c.l.b16 %v332
    %v397 = vunpack.c.l.b16 %v333
    %v398 = vunpack.c.l.b16 %v334
    %v399 = vunpack.c.l.b16 %v335
    %v400 = vunpack.c.l.b16 %v336
    %v401 = vunpack.c.l.b16 %v337
    %v402 = vunpack.c.l.b16 %v338
    %v403 = vunpack.c.l.b16 %v339
    %v404 = vunpack.c.l.b16 %v340
    %v405 = vunpack.c.l.b16 %v341
    %v406 = vunpack.c.l.b16 %v342
    %v407 = vunpack.c.l.b16 %v343
    %v408 = vunpack.c.l.b16 %v344
    %v409 = vunpack.c.l.b16 %v345
    %v410 = vunpack.c.l.b16 %v346
    %v411 = vunpack.c.l.b16 %v347
    %v412 = vunpack.c.l.b16 %v348
    %v413 = vunpack.c.l.b16 %v349
    %v414 = vunpack.c.l.b16 %v350
    %v415 = vunpack.c.l.b16 %v351
    %v416 = vpack.c.b16 %v385, %v384
    %v417 = vpack.c.b16 %v387, %v386
    %v418 = vpack.c.b16 %v389, %v388
    %v419 = vpack.c.b16 %v391, %v390
    %v420 = vpack.c.b16 %v393, %v392
    %v421 = vpack.c.b16 %v395, %v394
    %v422 = vpack.c.b16 %v397, %v396
    %v423 = vpack.c.b16 %v399, %v398
    %v424 = vpack.c.b16 %v401, %v400
    %v425 = vpack.c.b16 %v403, %v402
    %v426 = vpack.c.b16 %v405, %v404
    %v427 = vpack.c.b16 %v407, %v406
    %v428 = vpack.c.b16 %v409, %v408
    %v429 = vpack.c.b16 %v411, %v410
    %v430 = vpack.c.b16 %v413, %v412
    %v431 = vpack.c.b16 %v415, %v414
    %448 = vmatprep.subr.bf16.mxu0 0
    %449 = vmatpush1.bf16.msra.mxu0 %v416
    %450 = vmatprep.subr.bf16.mxu0 0
    %451 = vmatpush1.bf16.msra.mxu0 %v417
    %452 = vmatprep.subr.bf16.mxu0 0
    %453 = vmatpush1.bf16.msra.mxu0 %v418
    %454 = vmatprep.subr.bf16.mxu0 0
    %455 = vmatpush1.bf16.msra.mxu0 %v419
    %456 = vmatprep.subr.bf16.mxu0 0
    %457 = vmatpush1.bf16.msra.mxu0 %v420
    %458 = vmatprep.subr.bf16.mxu0 0
    %459 = vmatpush1.bf16.msra.mxu0 %v421
    %460 = vmatprep.subr.bf16.mxu0 0
    %461 = vmatpush1.bf16.msra.mxu0 %v422
    %462 = vmatprep.subr.bf16.mxu0 0
    %463 = vmatpush1.bf16.msra.mxu0 %v423
    %464 = vmatprep.subr.bf16.mxu0 0
    %465 = vmatpush1.bf16.msra.mxu0 %v424
    %466 = vmatprep.subr.bf16.mxu0 0
    %467 = vmatpush1.bf16.msra.mxu0 %v425
    %468 = vmatprep.subr.bf16.mxu0 0
    %469 = vmatpush1.bf16.msra.mxu0 %v426
    %470 = vmatprep.subr.bf16.mxu0 0
    %471 = vmatpush1.bf16.msra.mxu0 %v427
    %472 = vmatprep.subr.bf16.mxu0 0
    %473 = vmatpush1.bf16.msra.mxu0 %v428
    %474 = vmatprep.subr.bf16.mxu0 0
    %475 = vmatpush1.bf16.msra.mxu0 %v429
    %476 = vmatprep.subr.bf16.mxu0 0
    %477 = vmatpush1.bf16.msra.mxu0 %v430
    %478 = vmatprep.subr.bf16.mxu0 0
    %479 = vmatpush1.bf16.msra.mxu0 %v431
    %480 = vmatprep.mubr.bf16.mxu0 %v319
    %481 = vmatmul.mubr.bf16.gmra.mrb[0].mxu0 %v318
    %v482 = vpop.f32.mrb[0].mxu0
    %v483 = vadd.f32 0.0, %v482
    %v484 = vpop.f32.mrb[0].mxu0
    %v485 = vpop.f32.mrb[0].mxu0
    %v486 = vpop.f32.mrb[0].mxu0
    %487 = vdwg.mxu0
    %v488 = vadd.f32 %v302, %v483
    %v489 = vld [vmem:[%s7] sm:$0xff]
    %v490 = vpack.c.bf16 %v489, %v489
    %v491 = vld [vmem:[%s9] sm:$0x3]
    %vm492 = vcmask 31744
    %v494 = vsel %vm492, %v490, 0
    %vm496 = vcmask 1041408
    %v498 = vsel %vm496, %v491, 0
    %500 = vmatprep.subr.bf16.mxu0 0
    %501 = vmatpush1.bf16.msra.mxu0 %v498
    %502 = vmatprep.subr.bf16.mxu0 0
    %503 = vmatpush1.bf16.msra.mxu0 0
    %504 = vmatprep.subr.bf16.mxu0 0
    %505 = vmatpush1.bf16.msra.mxu0 0
    %506 = vmatprep.subr.bf16.mxu0 0
    %507 = vmatpush1.bf16.msra.mxu0 0
    %508 = vmatprep.subr.bf16.mxu0 0
    %509 = vmatpush1.bf16.msra.mxu0 0
    %510 = vmatprep.subr.bf16.mxu0 0
    %511 = vmatpush1.bf16.msra.mxu0 0
    %512 = vmatprep.subr.bf16.mxu0 0
    %513 = vmatpush1.bf16.msra.mxu0 0
    %514 = vmatprep.subr.bf16.mxu0 0
    %515 = vmatpush1.bf16.msra.mxu0 0
    %516 = vmatprep.subr.bf16.mxu0 0
    %517 = vmatpush1.bf16.msra.mxu0 0
    %518 = vmatprep.subr.bf16.mxu0 0
    %519 = vmatpush1.bf16.msra.mxu0 0
    %520 = vmatprep.subr.bf16.mxu0 0
    %521 = vmatpush1.bf16.msra.mxu0 0
    %522 = vmatprep.subr.bf16.mxu0 0
    %523 = vmatpush1.bf16.msra.mxu0 0
    %524 = vmatprep.subr.bf16.mxu0 0
    %525 = vmatpush1.bf16.msra.mxu0 0
    %526 = vmatprep.subr.bf16.mxu0 0
    %527 = vmatpush1.bf16.msra.mxu0 0
    %528 = vmatprep.subr.bf16.mxu0 0
    %529 = vmatpush1.bf16.msra.mxu0 0
    %530 = vmatprep.subr.bf16.mxu0 0
    %531 = vmatpush1.bf16.msra.mxu0 0
    %532 = vmatprep.mubr.bf16.mxu0 0
    %533 = vmatmul.mubr.bf16.gmra.mrb[0].mxu0 %v494
    %v534 = vpop.f32.mrb[0].mxu0
    %v535 = vadd.f32 0.0, %v534
    %v536 = vpop.f32.mrb[0].mxu0
    %v537 = vpop.f32.mrb[0].mxu0
    %v538 = vpop.f32.mrb[0].mxu0
    %539 = vdwg.mxu0
    %v540 = vadd.f32 %v488, %v535
    %541 = vst [vmem:[#allocation2] sm:$0xff] %v540
    // Predicated region
    $region42: #{tree_rnn_agent_forward_padded.1} parent=1 // pred_check
      _
    $region43: #{tree_rnn_agent_forward_padded.1} parent=1 // pred_check_branch
      %543 = sbr.rel (0) target = $region45
    $region44: #{tree_rnn_agent_forward_padded.1} parent=1 // pred_region
      _
    $region45: #{tree_rnn_agent_forward_padded.1} parent=1 // pred_fallthru
      _
    // Predicated region
    $region46: #{tree_rnn_agent_forward_padded.1} parent=1 // pred_check
      _
    $region47: #{tree_rnn_agent_forward_padded.1} parent=1 // pred_check_branch
      %545 = sbr.rel (0) target = $region49
    $region48: #{tree_rnn_agent_forward_padded.1} parent=1 // pred_region
      %s547 = ssub.s32 128, 128
      %548 = vsyncadd [#allocation3], %s547
      %s550 = sshll.u32 [#allocation2], 4
      %s551 = int_to_ptr.vmem [resolvable:$true] %s550
      %553 = dma.vmem_to_hbm [thread:$0]  %s551, 128, %s11, [#allocation3]
    $region49: #{tree_rnn_agent_forward_padded.1} parent=1 // pred_fallthru
      _
    // Predicated region
    $region50: #{tree_rnn_agent_forward_padded.1} parent=1 // pred_check
      _
    $region51: #{tree_rnn_agent_forward_padded.1} parent=1 // pred_check_branch
      %555 = sbr.rel (0) target = $region53
    $region52: #{tree_rnn_agent_forward_padded.1} parent=1 // pred_region
      _
    $region53: #{tree_rnn_agent_forward_padded.1} parent=1 // pred_fallthru
      _
    // Predicated region
    $region54: #{tree_rnn_agent_forward_padded.1} parent=1 // pred_check
      _
    $region55: #{tree_rnn_agent_forward_padded.1} parent=1 // pred_check_branch
      %557 = sbr.rel (0) target = $region57
    $region56: #{tree_rnn_agent_forward_padded.1} parent=1 // pred_region
      %558 = dma.done [#allocation3], 128
    $region57: #{tree_rnn_agent_forward_padded.1} parent=1 // pred_fallthru
      _
    %559 = vsyncpa [#allocation3], 1

</llo_original>
